<compile_context>
chip_gen: v7x
topology: tpu7x:2x2x1
jax: 0.10.0
libtpu: 0.0.40
codegen_flags: <defaults>
</compile_context>

<pallas_src>
import functools

import jax
import jax.numpy as jnp
from jax.experimental import pallas as pl
from jax.experimental.pallas import tpu as pltpu

OUT_FEATURES = 32
_MAX_BLOCK_B = 32768          # 4 MiB f32 output tile
_MIN_TILES = 4                # >= 2 TensorCores (v7x) x double-buffering
_SMALL_BATCH = 512            # below this, plain XLA beats a kernel launch


def _round_up(n, m):
    return ((n + m - 1) // m) * m


def pointgoal_encoder_ref(x, weight, bias):
    """Pure-JAX reference (also the small-batch fast path)."""
    x = x.astype(jnp.float32)
    feats = jnp.stack(
        [x[:, 0], jnp.cos(-x[:, 1]), jnp.sin(-x[:, 1])], axis=-1)   # (B, 3)
    return feats @ weight.astype(jnp.float32).T + bias.astype(jnp.float32)


def _pointgoal_kernel(xt_ref, w_ref, b_ref, o_ref, *, transpose_out):
    """One batch tile.

    xt_ref: (2, Bt) f32  -- row 0 = rho, row 1 = theta, batch on lanes.
    w_ref:  (32, 3) f32  -- native PyTorch nn.Linear weight.
    b_ref:  (32, 1) f32.
    o_ref:  (Bt, 32) if transpose_out else (32, Bt).
    """
    rho = xt_ref[0:1, :]                    # (1, Bt) lane-dense
    theta = xt_ref[1:2, :]                  # (1, Bt) lane-dense
    c = jnp.cos(theta)                      # cos(-t) == cos(t)
    s = jnp.sin(theta)                      # sin(-t) == -sin(t); folded below

    w0 = w_ref[:, 0:1]                      # (32, 1) native weight columns
    w1 = w_ref[:, 1:2]
    w2 = w_ref[:, 2:3]

    # Unrolled K=3 contraction as broadcast MACs on the VPU (keep off the MXU:
    # a (32,3)x(3,Bt) matmul would waste the systolic array).
    out_t = w0 * rho + w1 * c - w2 * s + b_ref[...]      # (32, Bt) f32

    if transpose_out:
        # Lane-dense -> batch-major relayout (XLU); the store is then directly
        # in the module's (Bt, 32) layout, so the wrapper does no extra pass.
        o_ref[...] = out_t.T.astype(o_ref.dtype)
    else:
        o_ref[...] = out_t.astype(o_ref.dtype)


def _run_pallas(x, weight, bias, block_b, direct, out_dtype):
    B = x.shape[0]
    # Tiny-batch corner: keep block dims <= array dims by padding up to one
    # block (negligible cost at that size).  For B >= block_b there is NO pad
    # and NO post-slice: Pallas clips the ragged last block on writeback.
    if B < block_b:
        x = jnp.pad(x, ((0, block_b - B), (0, 0)))
    b_eff = x.shape[0]
    grid_b = pl.cdiv(b_eff, block_b)

    xt = x.T.astype(jnp.float32)                          # (2, b_eff), tiny
    w = weight.astype(jnp.float32)                        # (32, 3)
    b2 = bias.astype(jnp.float32).reshape(OUT_FEATURES, 1)

    if direct:
        out_shape = jax.ShapeDtypeStruct((b_eff, OUT_FEATURES), out_dtype)
        out_spec = pl.BlockSpec((block_b, OUT_FEATURES), lambda i: (i, 0))
    else:
        out_shape = jax.ShapeDtypeStruct((OUT_FEATURES, b_eff), out_dtype)
        out_spec = pl.BlockSpec((OUT_FEATURES, block_b), lambda i: (0, i))

    out_tile_bytes = block_b * OUT_FEATURES * 4
    in_tile_bytes = block_b * 8 * 4                       # 2 rows pad to 8 sublanes
    vmem_limit = int(min(
        100 * 1024 * 1024,
        max(32 * 1024 * 1024,
            2 * (out_tile_bytes + in_tile_bytes)          # double-buffered tiles
            + 6 * out_tile_bytes                          # f32 temporaries / relayout
            + (2 << 20))))

    cost = pl.CostEstimate(
        flops=7 * OUT_FEATURES * b_eff,
        transcendentals=2 * b_eff,
        bytes_accessed=4 * (2 * b_eff + OUT_FEATURES * b_eff
                            + 3 * OUT_FEATURES + OUT_FEATURES))

    out = pl.pallas_call(
        functools.partial(_pointgoal_kernel, transpose_out=direct),
        out_shape=out_shape,
        grid_spec=pltpu.PrefetchScalarGridSpec(
            num_scalar_prefetch=0,
            grid=(grid_b,),
            in_specs=[
                pl.BlockSpec((2, block_b), lambda i: (0, i)),
                pl.BlockSpec((OUT_FEATURES, 3), lambda i: (0, 0)),
                pl.BlockSpec((OUT_FEATURES, 1), lambda i: (0, 0)),
            ],
            out_specs=out_spec,
        ),
        compiler_params=pltpu.CompilerParams(
            dimension_semantics=("parallel",),
            vmem_limit_bytes=vmem_limit),
        cost_estimate=cost,
    )(xt, w, b2)

    if not direct:
        out = out.T                                       # fallback layout only
    if b_eff != B:
        out = out[:B]
    return out


_DIRECT_OUT_OK = None


def _direct_out_layout_ok():
    """One-time probe: does the in-kernel (32,Bt)->(Bt,32) relayout lower on
    this Mosaic version?  If not, use the (32,B)-output fallback variant."""
    global _DIRECT_OUT_OK
    if _DIRECT_OUT_OK is None:
        try:
            x = jnp.zeros((256, 2), jnp.float32)
            w = jnp.zeros((OUT_FEATURES, 3), jnp.float32)
            b = jnp.zeros((OUT_FEATURES,), jnp.float32)
            jax.block_until_ready(
                _run_pallas(x, w, b, block_b=128, direct=True,
                            out_dtype=jnp.float32))
            _DIRECT_OUT_OK = True
        except Exception:  # depends on Mosaic transpose support
            _DIRECT_OUT_OK = False
    return _DIRECT_OUT_OK


def pointgoal_encoder(x, weight, bias, *, block_b=None, use_kernel=None,
                      out_dtype=None):
    """PointgoalEncoder forward.

    x: (B, 2) [rho, theta]; weight: (32, 3) native nn.Linear layout;
    bias: (32,).  Returns (B, 32).
    """
    B = x.shape[0]
    out_dtype = x.dtype if out_dtype is None else out_dtype
    if use_kernel is None:
        use_kernel = B >= _SMALL_BATCH
    if not use_kernel:
        # Small-batch fast path: a standalone kernel is pure launch overhead
        # here; let XLA fuse the three tiny ops into their neighbours.
        return pointgoal_encoder_ref(x, weight, bias).astype(out_dtype)
    if block_b is None:
        block_b = min(_MAX_BLOCK_B,
                      max(128, _round_up(pl.cdiv(B, _MIN_TILES), 128)))
    if block_b % 128 != 0:
        raise ValueError("block_b must be a multiple of 128")
    return _run_pallas(x, weight, bias, block_b, _direct_out_layout_ok(),
                       out_dtype)


if __name__ == "__main__":
    key = jax.random.PRNGKey(0)
    k_x, k_w, k_b, k_x2, k_x3 = jax.random.split(key, 5)

    # Deterministic synthetic nn.Linear(3, 32) parameters (U(-1/sqrt(3), 1/sqrt(3))).
    bound = 1.0 / jnp.sqrt(3.0)
    weight = jax.random.uniform(k_w, (OUT_FEATURES, 3), jnp.float32, -bound, bound)
    bias = jax.random.uniform(k_b, (OUT_FEATURES,), jnp.float32, -bound, bound)

    # 1) Tiny batch -> small-batch fast path (matches reference by construction).
    x_small = jax.random.normal(k_x, (8, 2), jnp.float32)
    out_small = jax.block_until_ready(pointgoal_encoder(x_small, weight, bias))
    assert out_small.shape == (8, OUT_FEATURES)
    assert jnp.allclose(out_small, pointgoal_encoder_ref(x_small, weight, bias),
                        atol=1e-5, rtol=1e-5), "fast-path mismatch"

    # 2) Pallas kernel, forced, default tiling (B=256 -> block 128, grid 2).
    x1 = jax.random.normal(k_x2, (256, 2), jnp.float32)
    out1 = jax.block_until_ready(
        pointgoal_encoder(x1, weight, bias, use_kernel=True))
    ref1 = pointgoal_encoder_ref(x1, weight, bias)
    assert out1.shape == (256, OUT_FEATURES)
    assert jnp.allclose(out1, ref1, atol=1e-5, rtol=1e-5), "kernel mismatch"

    # 3) Pallas kernel, multi-tile + ragged last block (B=1000, block 128 -> grid 8).
    x2 = jax.random.normal(k_x3, (1000, 2), jnp.float32)
    out2 = jax.block_until_ready(
        pointgoal_encoder(x2, weight, bias, use_kernel=True, block_b=128))
    ref2 = pointgoal_encoder_ref(x2, weight, bias)
    assert out2.shape == (1000, OUT_FEATURES)
    assert jnp.allclose(out2, ref2, atol=1e-5, rtol=1e-5), "ragged-tile mismatch"

    print("KERNEL_OK")
</pallas_src>

<mosaic_0001>
module attributes {stable_mosaic.version = 11 : i64} {
  func.func @_pointgoal_kernel(%arg0: i32, %arg1: memref<2x128xf32, #tpu.memory_space<vmem>>, %arg2: memref<32x3xf32, #tpu.memory_space<vmem>>, %arg3: memref<32x1xf32, #tpu.memory_space<vmem>>, %arg4: memref<128x32xf32, #tpu.memory_space<vmem>>) attributes {dimension_semantics = [#tpu.dimension_semantics<parallel>], iteration_bounds = array<i64: 2>, scalar_prefetch = 0 : i64, scratch_operands = 0 : i64, tpu.core_type = #tpu.core_type<tc>, window_params = [{transform_indices = @transform_0, window_bounds = array<i64: 2, 128>}, {pipeline_mode = #tpu.pipeline_mode<synchronous>, transform_indices = @transform_1, window_bounds = array<i64: 32, 3>}, {pipeline_mode = #tpu.pipeline_mode<synchronous>, transform_indices = @transform_2, window_bounds = array<i64: 32, 1>}, {transform_indices = @transform_3, window_bounds = array<i64: 128, 32>}]} {
    %c0 = arith.constant 0 : index
    %c0_0 = arith.constant 0 : index
    %0 = vector.load %arg1[%c0, %c0_0] : memref<2x128xf32, #tpu.memory_space<vmem>>, vector<1x128xf32>
    %c1 = arith.constant 1 : index
    %c0_1 = arith.constant 0 : index
    %1 = vector.load %arg1[%c1, %c0_1] : memref<2x128xf32, #tpu.memory_space<vmem>>, vector<1x128xf32>
    %2 = math.cos %1 : vector<1x128xf32>
    %3 = math.sin %1 : vector<1x128xf32>
    %c0_2 = arith.constant 0 : index
    %c0_3 = arith.constant 0 : index
    %4 = vector.load %arg2[%c0_2, %c0_3] : memref<32x3xf32, #tpu.memory_space<vmem>>, vector<32x1xf32>
    %c0_4 = arith.constant 0 : index
    %c1_5 = arith.constant 1 : index
    %5 = vector.load %arg2[%c0_4, %c1_5] : memref<32x3xf32, #tpu.memory_space<vmem>>, vector<32x1xf32>
    %c0_6 = arith.constant 0 : index
    %c2 = arith.constant 2 : index
    %6 = vector.load %arg2[%c0_6, %c2] : memref<32x3xf32, #tpu.memory_space<vmem>>, vector<32x1xf32>
    %7 = vector.broadcast %4 : vector<32x1xf32> to vector<32x128xf32>
    %8 = vector.broadcast %0 : vector<1x128xf32> to vector<32x128xf32>
    %9 = arith.mulf %7, %8 : vector<32x128xf32>
    %10 = vector.broadcast %5 : vector<32x1xf32> to vector<32x128xf32>
    %11 = vector.broadcast %2 : vector<1x128xf32> to vector<32x128xf32>
    %12 = arith.mulf %10, %11 : vector<32x128xf32>
    %13 = arith.addf %9, %12 : vector<32x128xf32>
    %14 = vector.broadcast %6 : vector<32x1xf32> to vector<32x128xf32>
    %15 = vector.broadcast %3 : vector<1x128xf32> to vector<32x128xf32>
    %16 = arith.mulf %14, %15 : vector<32x128xf32>
    %17 = arith.subf %13, %16 : vector<32x128xf32>
    %c0_7 = arith.constant 0 : index
    %c0_8 = arith.constant 0 : index
    %18 = vector.load %arg3[%c0_7, %c0_8] : memref<32x1xf32, #tpu.memory_space<vmem>>, vector<32x1xf32>
    %19 = vector.broadcast %18 : vector<32x1xf32> to vector<32x128xf32>
    %20 = arith.addf %17, %19 : vector<32x128xf32>
    %21 = tpu.transpose %20, [1, 0] : vector<32x128xf32> -> vector<128x32xf32>
    %c0_9 = arith.constant 0 : index
    %c0_10 = arith.constant 0 : index
    %22 = vector.load %arg4[%c0_9, %c0_10] : memref<128x32xf32, #tpu.memory_space<vmem>>, vector<128x32xf32>
    tpu.vector_store %arg4[%c0_9, %c0_10], %21 {strides = array<i32>} : memref<128x32xf32, #tpu.memory_space<vmem>>, vector<128x32xf32>,
    return
  }
  func.func @transform_0(%arg0: i32) -> (i32, i32) {
    %c0_i32 = arith.constant 0 : i32
    %c0_i32_0 = arith.constant 0 : i32
    return %c0_i32, %arg0 : i32, i32
  }
  func.func @transform_1(%arg0: i32) -> (i32, i32) {
    %c0_i32 = arith.constant 0 : i32
    %c0_i32_0 = arith.constant 0 : i32
    %c0_i32_1 = arith.constant 0 : i32
    return %c0_i32, %c0_i32_0 : i32, i32
  }
  func.func @transform_2(%arg0: i32) -> (i32, i32) {
    %c0_i32 = arith.constant 0 : i32
    %c0_i32_0 = arith.constant 0 : i32
    %c0_i32_1 = arith.constant 0 : i32
    return %c0_i32, %c0_i32_0 : i32, i32
  }
  func.func @transform_3(%arg0: i32) -> (i32, i32) {
    %c0_i32 = arith.constant 0 : i32
    %c0_i32_0 = arith.constant 0 : i32
    return %arg0, %c0_i32 : i32, i32
  }
}

module attributes {stable_mosaic.version = 11 : i64} {
  func.func @_pointgoal_kernel(%arg0: i32, %arg1: memref<2x128xf32, #tpu.memory_space<vmem>>, %arg2: memref<32x3xf32, #tpu.memory_space<vmem>>, %arg3: memref<32x1xf32, #tpu.memory_space<vmem>>, %arg4: memref<32x128xf32, #tpu.memory_space<vmem>>) attributes {dimension_semantics = [#tpu.dimension_semantics<parallel>], iteration_bounds = array<i64: 2>, scalar_prefetch = 0 : i64, scratch_operands = 0 : i64, tpu.core_type = #tpu.core_type<tc>, window_params = [{transform_indices = @transform_0, window_bounds = array<i64: 2, 128>}, {pipeline_mode = #tpu.pipeline_mode<synchronous>, transform_indices = @transform_1, window_bounds = array<i64: 32, 3>}, {pipeline_mode = #tpu.pipeline_mode<synchronous>, transform_indices = @transform_2, window_bounds = array<i64: 32, 1>}, {transform_indices = @transform_3, window_bounds = array<i64: 32, 128>}]} {
    %c0 = arith.constant 0 : index
    %c0_0 = arith.constant 0 : index
    %0 = vector.load %arg1[%c0, %c0_0] : memref<2x128xf32, #tpu.memory_space<vmem>>, vector<1x128xf32>
    %c1 = arith.constant 1 : index
    %c0_1 = arith.constant 0 : index
    %1 = vector.load %arg1[%c1, %c0_1] : memref<2x128xf32, #tpu.memory_space<vmem>>, vector<1x128xf32>
    %2 = math.cos %1 : vector<1x128xf32>
    %3 = math.sin %1 : vector<1x128xf32>
    %c0_2 = arith.constant 0 : index
    %c0_3 = arith.constant 0 : index
    %4 = vector.load %arg2[%c0_2, %c0_3] : memref<32x3xf32, #tpu.memory_space<vmem>>, vector<32x1xf32>
    %c0_4 = arith.constant 0 : index
    %c1_5 = arith.constant 1 : index
    %5 = vector.load %arg2[%c0_4, %c1_5] : memref<32x3xf32, #tpu.memory_space<vmem>>, vector<32x1xf32>
    %c0_6 = arith.constant 0 : index
    %c2 = arith.constant 2 : index
    %6 = vector.load %arg2[%c0_6, %c2] : memref<32x3xf32, #tpu.memory_space<vmem>>, vector<32x1xf32>
    %7 = vector.broadcast %4 : vector<32x1xf32> to vector<32x128xf32>
    %8 = vector.broadcast %0 : vector<1x128xf32> to vector<32x128xf32>
    %9 = arith.mulf %7, %8 : vector<32x128xf32>
    %10 = vector.broadcast %5 : vector<32x1xf32> to vector<32x128xf32>
    %11 = vector.broadcast %2 : vector<1x128xf32> to vector<32x128xf32>
    %12 = arith.mulf %10, %11 : vector<32x128xf32>
    %13 = arith.addf %9, %12 : vector<32x128xf32>
    %14 = vector.broadcast %6 : vector<32x1xf32> to vector<32x128xf32>
    %15 = vector.broadcast %3 : vector<1x128xf32> to vector<32x128xf32>
    %16 = arith.mulf %14, %15 : vector<32x128xf32>
    %17 = arith.subf %13, %16 : vector<32x128xf32>
    %c0_7 = arith.constant 0 : index
    %c0_8 = arith.constant 0 : index
    %18 = vector.load %arg3[%c0_7, %c0_8] : memref<32x1xf32, #tpu.memory_space<vmem>>, vector<32x1xf32>
    %19 = vector.broadcast %18 : vector<32x1xf32> to vector<32x128xf32>
    %20 = arith.addf %17, %19 : vector<32x128xf32>
    %c0_9 = arith.constant 0 : index
    %c0_10 = arith.constant 0 : index
    %21 = vector.load %arg4[%c0_9, %c0_10] : memref<32x128xf32, #tpu.memory_space<vmem>>, vector<32x128xf32>
    tpu.vector_store %arg4[%c0_9, %c0_10], %20 {strides = array<i32>} : memref<32x128xf32, #tpu.memory_space<vmem>>, vector<32x128xf32>,
    return
  }
  func.func @transform_0(%arg0: i32) -> (i32, i32) {
    %c0_i32 = arith.constant 0 : i32
    %c0_i32_0 = arith.constant 0 : i32
    return %c0_i32, %arg0 : i32, i32
  }
  func.func @transform_1(%arg0: i32) -> (i32, i32) {
    %c0_i32 = arith.constant 0 : i32
    %c0_i32_0 = arith.constant 0 : i32
    %c0_i32_1 = arith.constant 0 : i32
    return %c0_i32, %c0_i32_0 : i32, i32
  }
  func.func @transform_2(%arg0: i32) -> (i32, i32) {
    %c0_i32 = arith.constant 0 : i32
    %c0_i32_0 = arith.constant 0 : i32
    %c0_i32_1 = arith.constant 0 : i32
    return %c0_i32, %c0_i32_0 : i32, i32
  }
  func.func @transform_3(%arg0: i32) -> (i32, i32) {
    %c0_i32 = arith.constant 0 : i32
    %c0_i32_0 = arith.constant 0 : i32
    return %c0_i32, %arg0 : i32, i32
  }
}

</mosaic_0001>

<llo_original>
// kernel: tpu_custom_call.1
$region0: #{tpu_custom_call.1}
  #allocation0 [shape = 'u32[]', space=smem, size = 0x4, offset = 0x4, fixed_abs, tag = 'smem constant byte address 0x4 - core index']
  #allocation1 [shape = 'u32[144,128]{1,0:T(1,128)}', space=vmem, size = 0x12000, scoped, tag = 'internal scratch']
  %s0 = inlined_call_operand.vmem [shape: f32[2,256], index: 0, kind: input, shape index: {}]
  %s1 = inlined_call_operand.vmem [shape: f32[32,3], index: 1, kind: input, shape index: {}]
  %s2 = inlined_call_operand.vmem [shape: f32[32,1], index: 2, kind: input, shape index: {}]
  %s3 = inlined_call_operand.vmem [shape: f32[256,32], index: 3, kind: output, shape index: {}]
  %s4 = sld [smem:[#allocation0]]
  $region45: #{tpu_custom_call.1} parent=0
    _
  %s6 = ssub.s32 1, %s4
  %s7 = scalar_select 0, %s6, %s4
  loop: start=0, step=1, limit=4
  $region2: #{tpu_custom_call.1} parent=0 // loop_pre_header
    _
  $region3: #{tpu_custom_call.1} parent=0 // loop_header
    %s9 = sphi 0, %s13
    %p10 = scmp.ge.s32.totalorder %s9, 4
    %s19 = sphi 0, %s21
    %s22 = sphi 0, %s19
    %s23 = sphi 0, %s22
    %s39 = sphi 0, %s23
    %s43 = sphi 0, %s43
    %s45 = sphi 0, %s43
    %s46 = sphi 0, %s45
    %s60 = sphi 0, %s46
    %s64 = sphi 0, %s64
    %s66 = sphi 0, %s64
    %s67 = sphi 0, %s66
    %s81 = sphi 0, %s67
    %s87 = sphi 0, %s89
    %s90 = sphi 0, %s87
    %s91 = sphi 0, %s90
    %s107 = sphi 0, %s91
  $region4: #{tpu_custom_call.1} parent=0 // loop_header_branch
    %12 = sbr.rel (%p10) target = $region8
  $region5: #{tpu_custom_call.1} parent=0 // loop_body
    %s14 = ssub.s32 %s9, 1
    %s15 = ssub.s32 %s9, 2
    %s16 = sadd.s32 %s9, 1
    %s17 = ssub.s32 %s9, %s16
    %p18 = scmp.eq.s32.totalorder %s17, 0
    %s20 = sadd.s32 %s19, 1
    %s21 = scalar_select %p18, %s19, %s20
    %p24 = pneg %p18
    %p25 = scmp.eq.s32.totalorder %s9, 1
    %p26 = por %p24, %p25
    %p27 = scmp.ne.s32.totalorder %s19, %s22
    %p28 = scmp.eq.s32.totalorder %s9, 0
    %p29 = por %p27, %p28
    %p30 = scmp.ne.s32.totalorder %s19, %s22
    %p31 = scmp.eq.s32.totalorder %s14, 1
    %p32 = por %p30, %p31
    %p33 = scmp.ne.s32.totalorder %s22, %s23
    %p34 = scmp.eq.s32.totalorder %s14, 0
    %p35 = por %p33, %p34
    %p36 = scmp.ne.s32.totalorder %s22, %s23
    %p37 = scmp.eq.s32.totalorder %s15, 1
    %p38 = por %p36, %p37
    %p40 = scmp.ne.s32.totalorder %s23, %s39
    %p41 = scmp.eq.s32.totalorder %s15, 0
    %p42 = por %p40, %p41
    %s44 = sadd.s32 %s43, 1
    %p47 = scmp.eq.s32.totalorder %s9, 1
    %p48 = scmp.ne.s32.totalorder %s43, %s45
    %p49 = scmp.eq.s32.totalorder %s9, 0
    %p50 = por %p48, %p49
    %p51 = scmp.ne.s32.totalorder %s43, %s45
    %p52 = scmp.eq.s32.totalorder %s14, 1
    %p53 = por %p51, %p52
    %p54 = scmp.ne.s32.totalorder %s45, %s46
    %p55 = scmp.eq.s32.totalorder %s14, 0
    %p56 = por %p54, %p55
    %p57 = scmp.ne.s32.totalorder %s45, %s46
    %p58 = scmp.eq.s32.totalorder %s15, 1
    %p59 = por %p57, %p58
    %p61 = scmp.ne.s32.totalorder %s46, %s60
    %p62 = scmp.eq.s32.totalorder %s15, 0
    %p63 = por %p61, %p62
    %s65 = sadd.s32 %s64, 1
    %p68 = scmp.eq.s32.totalorder %s9, 1
    %p69 = scmp.ne.s32.totalorder %s64, %s66
    %p70 = scmp.eq.s32.totalorder %s9, 0
    %p71 = por %p69, %p70
    %p72 = scmp.ne.s32.totalorder %s64, %s66
    %p73 = scmp.eq.s32.totalorder %s14, 1
    %p74 = por %p72, %p73
    %p75 = scmp.ne.s32.totalorder %s66, %s67
    %p76 = scmp.eq.s32.totalorder %s14, 0
    %p77 = por %p75, %p76
    %p78 = scmp.ne.s32.totalorder %s66, %s67
    %p79 = scmp.eq.s32.totalorder %s15, 1
    %p80 = por %p78, %p79
    %p82 = scmp.ne.s32.totalorder %s67, %s81
    %p83 = scmp.eq.s32.totalorder %s15, 0
    %p84 = por %p82, %p83
    %s85 = ssub.s32 %s9, %s16
    %p86 = scmp.eq.s32.totalorder %s85, 0
    %s88 = sadd.s32 %s87, 1
    %s89 = scalar_select %p86, %s87, %s88
    %p92 = pneg %p86
    %p93 = scmp.eq.s32.totalorder %s9, 1
    %p94 = por %p92, %p93
    %p95 = scmp.ne.s32.totalorder %s87, %s90
    %p96 = scmp.eq.s32.totalorder %s9, 0
    %p97 = por %p95, %p96
    %p98 = scmp.ne.s32.totalorder %s87, %s90
    %p99 = scmp.eq.s32.totalorder %s14, 1
    %p100 = por %p98, %p99
    %p101 = scmp.ne.s32.totalorder %s90, %s91
    %p102 = scmp.eq.s32.totalorder %s14, 0
    %p103 = por %p101, %p102
    %p104 = scmp.ne.s32.totalorder %s90, %s91
    %p105 = scmp.eq.s32.totalorder %s15, 1
    %p106 = por %p104, %p105
    %p108 = scmp.ne.s32.totalorder %s91, %s107
    %p109 = scmp.eq.s32.totalorder %s15, 0
    %p110 = por %p108, %p109
    %p111 = scmp.le.s32.totalorder 1, %s9
    %p112 = scmp.lt.s32.totalorder %s9, 3
    %p113 = pnand %p111, %p112
    %p114 = pneg %p113
    // Predicated region
    $region9: #{tpu_custom_call.1} parent=5 // pred_check
      _
    $region10: #{tpu_custom_call.1} parent=5 // pred_check_branch
      %116 = sbr.rel (%p113) target = $region12
    $region11: #{tpu_custom_call.1} parent=5 // pred_region
      %s117 = ssub.s32 %s9, 1
      // Predicated region
      $region13: #{tpu_custom_call.1} parent=11 // pred_check
        %p118 = pneg %p56
      $region14: #{tpu_custom_call.1} parent=11 // pred_check_branch
        %120 = sbr.rel (%p118) target = $region16
      $region15: #{tpu_custom_call.1} parent=11 // pred_region
        _
      $region16: #{tpu_custom_call.1} parent=11 // pred_fallthru
        _
      // Predicated region
      $region17: #{tpu_custom_call.1} parent=11 // pred_check
        %p121 = pneg %p77
      $region18: #{tpu_custom_call.1} parent=11 // pred_check_branch
        %123 = sbr.rel (%p121) target = $region20
      $region19: #{tpu_custom_call.1} parent=11 // pred_region
        _
      $region20: #{tpu_custom_call.1} parent=11 // pred_fallthru
        _
    $region12: #{tpu_custom_call.1} parent=5 // pred_fallthru
      _
    %p124 = scmp.lt.s32.totalorder %s9, 2
    // Predicated region
    $region21: #{tpu_custom_call.1} parent=5 // pred_check
      %p125 = pneg %p124
    $region22: #{tpu_custom_call.1} parent=5 // pred_check_branch
      %127 = sbr.rel (%p125) target = $region24
    $region23: #{tpu_custom_call.1} parent=5 // pred_region
      // Predicated region
      $region25: #{tpu_custom_call.1} parent=23 // pred_check
        %p128 = pneg %p29
      $region26: #{tpu_custom_call.1} parent=23 // pred_check_branch
        %130 = sbr.rel (%p128) target = $region28
      $region27: #{tpu_custom_call.1} parent=23 // pred_region
        %p131 = scmp.lt.s32.totalorder %s9, 1
        %s132 = scalar_select %p131, %s9, 1
        %s133 = smul.addr %s132, 2
        %s134 = scalar_lea.vmem %s0, %s133
      $region28: #{tpu_custom_call.1} parent=23 // pred_fallthru
        _
    $region24: #{tpu_custom_call.1} parent=5 // pred_fallthru
      _
    %p135 = scmp.le.s32.totalorder 1, %s9
    %p136 = scmp.lt.s32.totalorder %s9, 3
    %p137 = pnand %p135, %p136
    %p138 = pneg %p137
    // Predicated region
    $region29: #{tpu_custom_call.1} parent=5 // pred_check
      _
    $region30: #{tpu_custom_call.1} parent=5 // pred_check_branch
      %140 = sbr.rel (%p137) target = $region32
    $region31: #{tpu_custom_call.1} parent=5 // pred_region
      %s141 = ssub.s32 %s9, 1
      %p142 = scmp.lt.s32.totalorder %s14, 1
      %s143 = scalar_select %p142, %s14, 1
      %s144 = smul.addr %s143, 2
      %s145 = scalar_lea.vmem %s0, %s144
      %p146 = pneg %p35
      %p147 = pneg %p32
      %p148 = pneg %p56
      %p149 = pneg %p53
      %p150 = pneg %p77
      %p151 = pneg %p74
      %p152 = pneg %p103
      %p153 = pneg %p100
      %s154 = smul.u32 16, %s14
      %p155 = scmp.lt.s32.totalorder %s154, 31
      %s156 = scalar_select %p155, %s154, 31
      %s157 = smul.addr %s156, 8
      %s158 = scalar_lea.vmem %s3, %s157
      %p159 = scmp.lt.s32.totalorder %s14, 1
      %s160 = scalar_select %p159, %s14, 1
      %s161 = smul.addr %s160, 2
      %s162 = scalar_lea.vmem %s0, %s161
      %s163 = smul.u32 16, %s14
      %p164 = scmp.lt.s32.totalorder %s163, 31
      %s165 = scalar_select %p164, %s163, 31
      %s166 = smul.addr %s165, 8
      %s167 = scalar_lea.vmem %s3, %s166
      %s168 = smul.u32 16, %s14
      %v169 = vld [vmem:[%s162] sm:$0x1]
      %v170 = vld [vmem:[%s162 + $0x1] sm:$0x1]
      %v171 = vand.u32 2147483647, %v170
      %vm172 = vcmp.le.f32.partialorder %v171, 0.7853982
      %vm173 = vcmp.lt.s32.totalorder %v170, 0
      %v174 = vand.u32 %v170, 2139095040
      %v175 = vshrl.u32 %v174, 23
      %v176 = vsub.s32 %v175, 127
      %v177 = vand.u32 2147483647, %v170
      %v178 = vand.u32 %v177, 8388607
      %v179 = vor.u32 %v178, 8388608
      %v180 = vsub.s32 0, %v179
      %v181 = vadd.s32 %v176, 1
      %vm182 = vcmp.gt.s32.totalorder %v181, 0
      %v183 = vsel %vm182, %v181, 0
      %v184 = vshrl.u32 %v183, 5
      %v185 = vand.u32 %v183, 31
      %v186 = vsub.s32 32, %v185
      %v187 = vshrl.u32 683565275, %v186
      %v188 = vshll.u32 683565275, %v185
      %v189 = vshrl.u32 2475754826, %v186
      %v190 = vor.u32 %v188, %v189
      %v191 = vshll.u32 2475754826, %v185
      %v192 = vshrl.u32 2131351028, %v186
      %v193 = vor.u32 %v191, %v192
      %v194 = vshll.u32 2131351028, %v185
      %v195 = vshrl.u32 2102212464, %v186
      %v196 = vor.u32 %v194, %v195
      %v197 = vshll.u32 2102212464, %v185
      %v198 = vshrl.u32 920167782, %v186
      %v199 = vor.u32 %v197, %v198
      %v200 = vshll.u32 920167782, %v185
      %v201 = vshrl.u32 1326507024, %v186
      %v202 = vor.u32 %v200, %v201
      %vm203 = vcmp.lt.s32.totalorder %v184, 1
      %vm204 = vcmp.lt.s32.totalorder %v184, 2
      %vm205 = vcmp.lt.s32.totalorder %v184, 3
      %vm206 = vcmp.lt.s32.totalorder %v184, 4
      %v207 = vsel %vm203, %v187, %v190
      %v208 = vsel %vm206, %v196, 2102212464
      %v209 = vsel %vm205, %v193, %v208
      %v210 = vsel %vm204, %v207, %v209
      %v211 = vsel %vm203, %v190, %v193
      %v212 = vsel %vm206, %v199, 920167782
      %v213 = vsel %vm205, %v196, %v212
      %v214 = vsel %vm204, %v211, %v213
      %v215 = vsel %vm203, %v193, %v196
      %v216 = vsel %vm206, %v202, 1326507024
      %v217 = vsel %vm205, %v199, %v216
      %v218 = vsel %vm204, %v215, %v217
      %v219 = vshll.u32 %v179, 8
      %v220 = vmul.u32.u64.compose %v219, %v218
      %v221 = vextract.low.u32 %v220
      %v222 = vextract.high.u32 %v220
      %v223 = vmul.u32.u64.compose %v219, %v214
      %v224 = vextract.low.u32 %v223
      %v225 = vextract.high.u32 %v223
      %v226 = vmul.u32 %v219, %v210
      %v227 = vadd.s32 %v222, %v224
      %vm228 = vc.u32 %v222, %v224
      %v229 = vadd.s32 %v225, 1
      %v230 = vsel %vm228, %v229, %v225
      %v231 = vadd.s32 %v226, %v230
      %v232 = vadd.s32 %v231, 536870912
      %v233 = vshrl.u32 %v232, 30
      %v234 = vshll.u32 %v233, 30
      %v235 = vsub.s32 %v231, %v234
      %vm236 = vcmp.lt.s32.totalorder %v235, 0
      %v237 = vsub.s32 0, %v235
      %v238 = vsel %vm236, %v237, %v235
      %v239 = vclz %v238
      %v240 = vsub.s32 %v239, 2
      %vm241 = vcmp.gt.s32.totalorder 0, %v240
      %v242 = vsel %vm241, 0, %v240
      %v243 = vsub.s32 32, %v242
      %v244 = vshll.u32 %v235, %v242
      %v245 = vshrl.u32 %v227, %v243
      %v246 = vor.u32 %v244, %v245
      %v247 = vsub.s32 4294967266, %v242
      %v248 = vadd.s32 %v247, 127
      %v249 = vshll.u32 %v248, 23
      %v250 = vor.u32 4788187, %v249
      %v251 = vand.u32 2147483647, %v250
      %v253 = vcvt.s32.f32 %v246
      %v254 = vmul.f32 %v253, %v251
      %v255 = vxor.u32 %v254, 2147483648
      %v256 = vsel %vm173, %v255, %v254
      %v257 = vsub.s32 4, %v233
      %v258 = vsel %vm173, %v257, %v233
      %v259 = vsel %vm172, %v170, %v256
      %v260 = vsel %vm172, 0, %v258
      %v261 = vcosq.f32.pop %v259
      %v262 = vsinq.f32.pop %v259
      %vm263 = vweird.f32 %v170
      %v264 = vand.u32 %v260, 3
      %vm265 = vcmp.lt.s32.totalorder %v264, 2
      %vm266 = vcmp.eq.s32.totalorder %v264, 0
      %v267 = vxor.u32 %v262, 2147483648
      %v268 = vsel %vm266, %v261, %v267
      %vm269 = vcmp.eq.s32.totalorder %v264, 2
      %v270 = vxor.u32 %v261, 2147483648
      %v271 = vsel %vm269, %v270, %v262
      %v272 = vsel %vm265, %v268, %v271
      %v273 = vsel %vm263, nan, %v272
      %v274 = vand.u32 2147483647, %v170
      %vm275 = vcmp.le.f32.partialorder %v274, 0.7853982
      %vm276 = vcmp.lt.s32.totalorder %v170, 0
      %v277 = vand.u32 %v170, 2139095040
      %v278 = vshrl.u32 %v277, 23
      %v279 = vsub.s32 %v278, 127
      %v280 = vand.u32 2147483647, %v170
      %v281 = vand.u32 %v280, 8388607
      %v282 = vor.u32 %v281, 8388608
      %v283 = vsub.s32 0, %v282
      %v284 = vadd.s32 %v279, 1
      %vm285 = vcmp.gt.s32.totalorder %v284, 0
      %v286 = vsel %vm285, %v284, 0
      %v287 = vshrl.u32 %v286, 5
      %v288 = vand.u32 %v286, 31
      %v289 = vsub.s32 32, %v288
      %v290 = vshrl.u32 683565275, %v289
      %v291 = vshll.u32 683565275, %v288
      %v292 = vshrl.u32 2475754826, %v289
      %v293 = vor.u32 %v291, %v292
      %v294 = vshll.u32 2475754826, %v288
      %v295 = vshrl.u32 2131351028, %v289
      %v296 = vor.u32 %v294, %v295
      %v297 = vshll.u32 2131351028, %v288
      %v298 = vshrl.u32 2102212464, %v289
      %v299 = vor.u32 %v297, %v298
      %v300 = vshll.u32 2102212464, %v288
      %v301 = vshrl.u32 920167782, %v289
      %v302 = vor.u32 %v300, %v301
      %v303 = vshll.u32 920167782, %v288
      %v304 = vshrl.u32 1326507024, %v289
      %v305 = vor.u32 %v303, %v304
      %vm306 = vcmp.lt.s32.totalorder %v287, 1
      %vm307 = vcmp.lt.s32.totalorder %v287, 2
      %vm308 = vcmp.lt.s32.totalorder %v287, 3
      %vm309 = vcmp.lt.s32.totalorder %v287, 4
      %v310 = vsel %vm306, %v290, %v293
      %v311 = vsel %vm309, %v299, 2102212464
      %v312 = vsel %vm308, %v296, %v311
      %v313 = vsel %vm307, %v310, %v312
      %v314 = vsel %vm306, %v293, %v296
      %v315 = vsel %vm309, %v302, 920167782
      %v316 = vsel %vm308, %v299, %v315
      %v317 = vsel %vm307, %v314, %v316
      %v318 = vsel %vm306, %v296, %v299
      %v319 = vsel %vm309, %v305, 1326507024
      %v320 = vsel %vm308, %v302, %v319
      %v321 = vsel %vm307, %v318, %v320
      %v322 = vshll.u32 %v282, 8
      %v323 = vmul.u32.u64.compose %v322, %v321
      %v324 = vextract.low.u32 %v323
      %v325 = vextract.high.u32 %v323
      %v326 = vmul.u32.u64.compose %v322, %v317
      %v327 = vextract.low.u32 %v326
      %v328 = vextract.high.u32 %v326
      %v329 = vmul.u32 %v322, %v313
      %v330 = vadd.s32 %v325, %v327
      %vm331 = vc.u32 %v325, %v327
      %v332 = vadd.s32 %v328, 1
      %v333 = vsel %vm331, %v332, %v328
      %v334 = vadd.s32 %v329, %v333
      %v335 = vadd.s32 %v334, 536870912
      %v336 = vshrl.u32 %v335, 30
      %v337 = vshll.u32 %v336, 30
      %v338 = vsub.s32 %v334, %v337
      %vm339 = vcmp.lt.s32.totalorder %v338, 0
      %v340 = vsub.s32 0, %v338
      %v341 = vsel %vm339, %v340, %v338
      %v342 = vclz %v341
      %v343 = vsub.s32 %v342, 2
      %vm344 = vcmp.gt.s32.totalorder 0, %v343
      %v345 = vsel %vm344, 0, %v343
      %v346 = vsub.s32 32, %v345
      %v347 = vshll.u32 %v338, %v345
      %v348 = vshrl.u32 %v330, %v346
      %v349 = vor.u32 %v347, %v348
      %v350 = vsub.s32 4294967266, %v345
      %v351 = vadd.s32 %v350, 127
      %v352 = vshll.u32 %v351, 23
      %v353 = vor.u32 4788187, %v352
      %v354 = vand.u32 2147483647, %v353
      %v356 = vcvt.s32.f32 %v349
      %v357 = vmul.f32 %v356, %v354
      %v358 = vxor.u32 %v357, 2147483648
      %v359 = vsel %vm276, %v358, %v357
      %v360 = vsub.s32 4, %v336
      %v361 = vsel %vm276, %v360, %v336
      %v362 = vsel %vm275, %v170, %v359
      %v363 = vsel %vm275, 0, %v361
      %v364 = vcosq.f32.pop %v362
      %v365 = vsinq.f32.pop %v362
      %vm366 = vweird.f32 %v170
      %v367 = vadd.s32 %v363, 3
      %v368 = vand.u32 %v367, 3
      %vm369 = vcmp.lt.s32.totalorder %v368, 2
      %vm370 = vcmp.eq.s32.totalorder %v368, 0
      %v371 = vxor.u32 %v365, 2147483648
      %v372 = vsel %vm370, %v364, %v371
      %vm373 = vcmp.eq.s32.totalorder %v368, 2
      %v374 = vxor.u32 %v364, 2147483648
      %v375 = vsel %vm373, %v374, %v365
      %v376 = vsel %vm369, %v372, %v375
      %v377 = vsel %vm366, nan, %v376
      %v378 = vld [vmem:[%s1] sm:$0xff]
      %v379 = vld [vmem:[%s1 + $0x8] sm:$0xff]
      %v380 = vld [vmem:[%s1 + $0x10] sm:$0xff]
      %v381 = vld [vmem:[%s1 + $0x18] sm:$0xff]
      %383 = vset.pattern.permute.xlu0 0
      %384 = vperm.xlu0 %383, %v378
      %v385 = vpop.permute.xlu0 %384
      %388 = vset.pattern.permute.xlu0 0
      %389 = vperm.xlu0 %388, %v379
      %v390 = vpop.permute.xlu0 %389
      %393 = vset.pattern.permute.xlu0 0
      %394 = vperm.xlu0 %393, %v380
      %v395 = vpop.permute.xlu0 %394
      %398 = vset.pattern.permute.xlu0 0
      %399 = vperm.xlu0 %398, %v381
      %v400 = vpop.permute.xlu0 %399
      %v402 = vlaneseq
      %v403 = vshrl.u32 %v402, 7
      %v404 = vsub.s32 0, %v403
      %v405 = vrot.slane %v169, %v404
      %v406 = vmul.f32 %v385, %v405
      %v407 = vmul.f32 %v390, %v405
      %v408 = vmul.f32 %v395, %v405
      %v409 = vmul.f32 %v400, %v405
      %410 = vset.pattern.permute.xlu0 1
      %411 = vperm.xlu0 %410, %v378
      %v412 = vpop.permute.xlu0 %411
      %414 = vset.pattern.permute.xlu0 1
      %415 = vperm.xlu0 %414, %v379
      %v416 = vpop.permute.xlu0 %415
      %418 = vset.pattern.permute.xlu0 1
      %419 = vperm.xlu0 %418, %v380
      %v420 = vpop.permute.xlu0 %419
      %422 = vset.pattern.permute.xlu0 1
      %423 = vperm.xlu0 %422, %v381
      %v424 = vpop.permute.xlu0 %423
      %v426 = vlaneseq
      %v427 = vshrl.u32 %v426, 7
      %v428 = vsub.s32 0, %v427
      %v429 = vrot.slane %v273, %v428
      %v430 = vmul.f32 %v412, %v429
      %v431 = vmul.f32 %v416, %v429
      %v432 = vmul.f32 %v420, %v429
      %v433 = vmul.f32 %v424, %v429
      %v434 = vadd.f32 %v406, %v430
      %v435 = vadd.f32 %v407, %v431
      %v436 = vadd.f32 %v408, %v432
      %v437 = vadd.f32 %v409, %v433
      %438 = vset.pattern.permute.xlu0 2
      %439 = vperm.xlu0 %438, %v378
      %v440 = vpop.permute.xlu0 %439
      %442 = vset.pattern.permute.xlu0 2
      %443 = vperm.xlu0 %442, %v379
      %v444 = vpop.permute.xlu0 %443
      %446 = vset.pattern.permute.xlu0 2
      %447 = vperm.xlu0 %446, %v380
      %v448 = vpop.permute.xlu0 %447
      %450 = vset.pattern.permute.xlu0 2
      %451 = vperm.xlu0 %450, %v381
      %v452 = vpop.permute.xlu0 %451
      %v454 = vlaneseq
      %v455 = vshrl.u32 %v454, 7
      %v456 = vsub.s32 0, %v455
      %v457 = vrot.slane %v377, %v456
      %v458 = vmul.f32 %v440, %v457
      %v459 = vmul.f32 %v444, %v457
      %v460 = vmul.f32 %v448, %v457
      %v461 = vmul.f32 %v452, %v457
      %v462 = vsub.f32 %v434, %v458
      %v463 = vsub.f32 %v435, %v459
      %v464 = vsub.f32 %v436, %v460
      %v465 = vsub.f32 %v437, %v461
      %v466 = vld [vmem:[%s2] sm:$0xff]
      %v467 = vld [vmem:[%s2 + $0x8] sm:$0xff]
      %v468 = vld [vmem:[%s2 + $0x10] sm:$0xff]
      %v469 = vld [vmem:[%s2 + $0x18] sm:$0xff]
      %471 = vset.pattern.permute.xlu0 0
      %472 = vperm.xlu0 %471, %v466
      %v473 = vpop.permute.xlu0 %472
      %476 = vset.pattern.permute.xlu0 0
      %477 = vperm.xlu0 %476, %v467
      %v478 = vpop.permute.xlu0 %477
      %481 = vset.pattern.permute.xlu0 0
      %482 = vperm.xlu0 %481, %v468
      %v483 = vpop.permute.xlu0 %482
      %486 = vset.pattern.permute.xlu0 0
      %487 = vperm.xlu0 %486, %v469
      %v488 = vpop.permute.xlu0 %487
      %v490 = vadd.f32 %v462, %v473
      %v491 = vadd.f32 %v463, %v478
      %v492 = vadd.f32 %v464, %v483
      %v493 = vadd.f32 %v465, %v488
      %494 = vxpose.xlu0.b32.start [1/16] %v490, 128
      %495 = vxpose.xlu0.b32.cont [2/16] %v491, 128
      %496 = vxpose.xlu0.b32.cont [3/16] %v492, 128
      %497 = vxpose.xlu0.b32.cont [4/16] %v493, 128
      %498 = vxpose.xlu0.b32.cont [5/16] 0.0, 128
      %499 = vxpose.xlu0.b32.cont [6/16] 0.0, 128
      %500 = vxpose.xlu0.b32.cont [7/16] 0.0, 128
      %501 = vxpose.xlu0.b32.cont [8/16] 0.0, 128
      %502 = vxpose.xlu0.b32.cont [9/16] 0.0, 128
      %503 = vxpose.xlu0.b32.cont [10/16] 0.0, 128
      %504 = vxpose.xlu0.b32.cont [11/16] 0.0, 128
      %505 = vxpose.xlu0.b32.cont [12/16] 0.0, 128
      %506 = vxpose.xlu0.b32.cont [13/16] 0.0, 128
      %507 = vxpose.xlu0.b32.cont [14/16] 0.0, 128
      %508 = vxpose.xlu0.b32.cont [15/16] 0.0, 128
      %509 = vxpose.xlu0.b32.end [16/16] 0.0, 128
      %v510 = vpop.trf.xlu0
      %v511 = vpop.trf.xlu0
      %v512 = vpop.trf.xlu0
      %v513 = vpop.trf.xlu0
      %v514 = vpop.trf.xlu0
      %v515 = vpop.trf.xlu0
      %v516 = vpop.trf.xlu0
      %v517 = vpop.trf.xlu0
      %v518 = vpop.trf.xlu0
      %v519 = vpop.trf.xlu0
      %v520 = vpop.trf.xlu0
      %v521 = vpop.trf.xlu0
      %v522 = vpop.trf.xlu0
      %v523 = vpop.trf.xlu0
      %v524 = vpop.trf.xlu0
      %v525 = vpop.trf.xlu0
      %vm526 = vcmask 261120
      %527 = vst.msk [vmem:[%s167] sm:$0xff] %vm526, %v510
      %528 = vst.msk [vmem:[%s167 + $0x8] sm:$0xff] %vm526, %v511
      %529 = vst.msk [vmem:[%s167 + $0x10] sm:$0xff] %vm526, %v512
      %530 = vst.msk [vmem:[%s167 + $0x18] sm:$0xff] %vm526, %v513
      %531 = vst.msk [vmem:[%s167 + $0x20] sm:$0xff] %vm526, %v514
      %532 = vst.msk [vmem:[%s167 + $0x28] sm:$0xff] %vm526, %v515
      %533 = vst.msk [vmem:[%s167 + $0x30] sm:$0xff] %vm526, %v516
      %534 = vst.msk [vmem:[%s167 + $0x38] sm:$0xff] %vm526, %v517
      %535 = vst.msk [vmem:[%s167 + $0x40] sm:$0xff] %vm526, %v518
      %536 = vst.msk [vmem:[%s167 + $0x48] sm:$0xff] %vm526, %v519
      %537 = vst.msk [vmem:[%s167 + $0x50] sm:$0xff] %vm526, %v520
      %538 = vst.msk [vmem:[%s167 + $0x58] sm:$0xff] %vm526, %v521
      %539 = vst.msk [vmem:[%s167 + $0x60] sm:$0xff] %vm526, %v522
      %540 = vst.msk [vmem:[%s167 + $0x68] sm:$0xff] %vm526, %v523
      %541 = vst.msk [vmem:[%s167 + $0x70] sm:$0xff] %vm526, %v524
      %542 = vst.msk [vmem:[%s167 + $0x78] sm:$0xff] %vm526, %v525
      %s543 = smul.u32 16, %s14
      %p544 = scmp.lt.s32.totalorder %s543, 31
      %s545 = scalar_select %p544, %s543, 31
      %s546 = smul.addr %s545, 8
      %s547 = scalar_lea.vmem %s3, %s546
      // Predicated region
      $region33: #{tpu_custom_call.1} parent=31 // pred_check
        %p548 = pneg %p100
      $region34: #{tpu_custom_call.1} parent=31 // pred_check_branch
        %550 = sbr.rel (%p548) target = $region36
      $region35: #{tpu_custom_call.1} parent=31 // pred_region
        %s551 = smul.u32 16, %s14
      $region36: #{tpu_custom_call.1} parent=31 // pred_fallthru
        _
    $region32: #{tpu_custom_call.1} parent=5 // pred_fallthru
      _
    %p552 = scmp.le.s32.totalorder 2, %s9
    // Predicated region
    $region37: #{tpu_custom_call.1} parent=5 // pred_check
      %p553 = pneg %p552
    $region38: #{tpu_custom_call.1} parent=5 // pred_check_branch
      %555 = sbr.rel (%p553) target = $region40
    $region39: #{tpu_custom_call.1} parent=5 // pred_region
      %s556 = ssub.s32 %s9, 2
      // Predicated region
      $region41: #{tpu_custom_call.1} parent=39 // pred_check
        %p557 = pneg %p106
      $region42: #{tpu_custom_call.1} parent=39 // pred_check_branch
        %559 = sbr.rel (%p557) target = $region44
      $region43: #{tpu_custom_call.1} parent=39 // pred_region
        %s560 = smul.u32 16, %s15
        %p561 = scmp.lt.s32.totalorder %s560, 31
        %s562 = scalar_select %p561, %s560, 31
        %s563 = smul.addr %s562, 8
        %s564 = scalar_lea.vmem %s3, %s563
      $region44: #{tpu_custom_call.1} parent=39 // pred_fallthru
        _
    $region40: #{tpu_custom_call.1} parent=5 // pred_fallthru
      _
  $region6: #{tpu_custom_call.1} parent=0 // loop_footer
    %s13 = sadd.s32 1, %s9
  $region7: #{tpu_custom_call.1} parent=0 // loop_footer_branch
    %8 = sbr.rel target = $region3
  $region8: #{tpu_custom_call.1} parent=0 // loop_exit
    _

// kernel: tpu_custom_call.1
$region0: #{tpu_custom_call.1}
  #allocation0 [shape = 'u32[]', space=smem, size = 0x4, offset = 0x4, fixed_abs, tag = 'smem constant byte address 0x4 - core index']
  #allocation1 [shape = 'u32[144,128]{1,0:T(1,128)}', space=vmem, size = 0x12000, scoped, tag = 'internal scratch']
  %s0 = inlined_call_operand.vmem [shape: f32[2,256], index: 0, kind: input, shape index: {}]
  %s1 = inlined_call_operand.vmem [shape: f32[32,3], index: 1, kind: input, shape index: {}]
  %s2 = inlined_call_operand.vmem [shape: f32[32,1], index: 2, kind: input, shape index: {}]
  %s3 = inlined_call_operand.hbm [shape: f32[32,256], index: 3, kind: output, shape index: {}]
  %s4 = sld [smem:[#allocation0]]
  $region45: #{tpu_custom_call.1} parent=0
    _
  %s6 = ssub.s32 1, %s4
  %s7 = scalar_select 0, %s6, %s4
  $region1: #{tpu_custom_call.1} parent=0
    #allocation2 [shape = 'u8[32768]{0}', space=vmem, size = 0x8000, scoped, tag = 'output window, operand 0']
    #allocation3 [shape = 's32[2]{0}', space=sflag, size = 0x8, scoped, tag = 'scoped memory for tpu_custom_call.1']
    %8 = vsyncpa [#allocation3], 0
    %s9 = scalar_lea.sflag [#allocation3], 1
    %10 = vsyncpa %s9, 0
    loop: start=0, step=1, limit=4
    $region2: #{tpu_custom_call.1} parent=1 // loop_pre_header
      _
    $region3: #{tpu_custom_call.1} parent=1 // loop_header
      %s12 = sphi 0, %s16
      %p13 = scmp.ge.s32.totalorder %s12, 4
      %s22 = sphi 0, %s24
      %s25 = sphi 0, %s22
      %s26 = sphi 0, %s25
      %s42 = sphi 0, %s26
      %s46 = sphi 0, %s46
      %s48 = sphi 0, %s46
      %s49 = sphi 0, %s48
      %s63 = sphi 0, %s49
      %s67 = sphi 0, %s67
      %s69 = sphi 0, %s67
      %s70 = sphi 0, %s69
      %s84 = sphi 0, %s70
      %s90 = sphi 0, %s92
      %s93 = sphi 0, %s90
      %s94 = sphi 0, %s93
      %s110 = sphi 0, %s94
    $region4: #{tpu_custom_call.1} parent=1 // loop_header_branch
      %15 = sbr.rel (%p13) target = $region8
    $region5: #{tpu_custom_call.1} parent=1 // loop_body
      %s17 = ssub.s32 %s12, 1
      %s18 = ssub.s32 %s12, 2
      %s19 = sadd.s32 %s12, 1
      %s20 = ssub.s32 %s12, %s19
      %p21 = scmp.eq.s32.totalorder %s20, 0
      %s23 = sadd.s32 %s22, 1
      %s24 = scalar_select %p21, %s22, %s23
      %p27 = pneg %p21
      %p28 = scmp.eq.s32.totalorder %s12, 1
      %p29 = por %p27, %p28
      %p30 = scmp.ne.s32.totalorder %s22, %s25
      %p31 = scmp.eq.s32.totalorder %s12, 0
      %p32 = por %p30, %p31
      %p33 = scmp.ne.s32.totalorder %s22, %s25
      %p34 = scmp.eq.s32.totalorder %s17, 1
      %p35 = por %p33, %p34
      %p36 = scmp.ne.s32.totalorder %s25, %s26
      %p37 = scmp.eq.s32.totalorder %s17, 0
      %p38 = por %p36, %p37
      %p39 = scmp.ne.s32.totalorder %s25, %s26
      %p40 = scmp.eq.s32.totalorder %s18, 1
      %p41 = por %p39, %p40
      %p43 = scmp.ne.s32.totalorder %s26, %s42
      %p44 = scmp.eq.s32.totalorder %s18, 0
      %p45 = por %p43, %p44
      %s47 = sadd.s32 %s46, 1
      %p50 = scmp.eq.s32.totalorder %s12, 1
      %p51 = scmp.ne.s32.totalorder %s46, %s48
      %p52 = scmp.eq.s32.totalorder %s12, 0
      %p53 = por %p51, %p52
      %p54 = scmp.ne.s32.totalorder %s46, %s48
      %p55 = scmp.eq.s32.totalorder %s17, 1
      %p56 = por %p54, %p55
      %p57 = scmp.ne.s32.totalorder %s48, %s49
      %p58 = scmp.eq.s32.totalorder %s17, 0
      %p59 = por %p57, %p58
      %p60 = scmp.ne.s32.totalorder %s48, %s49
      %p61 = scmp.eq.s32.totalorder %s18, 1
      %p62 = por %p60, %p61
      %p64 = scmp.ne.s32.totalorder %s49, %s63
      %p65 = scmp.eq.s32.totalorder %s18, 0
      %p66 = por %p64, %p65
      %s68 = sadd.s32 %s67, 1
      %p71 = scmp.eq.s32.totalorder %s12, 1
      %p72 = scmp.ne.s32.totalorder %s67, %s69
      %p73 = scmp.eq.s32.totalorder %s12, 0
      %p74 = por %p72, %p73
      %p75 = scmp.ne.s32.totalorder %s67, %s69
      %p76 = scmp.eq.s32.totalorder %s17, 1
      %p77 = por %p75, %p76
      %p78 = scmp.ne.s32.totalorder %s69, %s70
      %p79 = scmp.eq.s32.totalorder %s17, 0
      %p80 = por %p78, %p79
      %p81 = scmp.ne.s32.totalorder %s69, %s70
      %p82 = scmp.eq.s32.totalorder %s18, 1
      %p83 = por %p81, %p82
      %p85 = scmp.ne.s32.totalorder %s70, %s84
      %p86 = scmp.eq.s32.totalorder %s18, 0
      %p87 = por %p85, %p86
      %s88 = ssub.s32 %s12, %s19
      %p89 = scmp.eq.s32.totalorder %s88, 0
      %s91 = sadd.s32 %s90, 1
      %s92 = scalar_select %p89, %s90, %s91
      %p95 = pneg %p89
      %p96 = scmp.eq.s32.totalorder %s12, 1
      %p97 = por %p95, %p96
      %p98 = scmp.ne.s32.totalorder %s90, %s93
      %p99 = scmp.eq.s32.totalorder %s12, 0
      %p100 = por %p98, %p99
      %p101 = scmp.ne.s32.totalorder %s90, %s93
      %p102 = scmp.eq.s32.totalorder %s17, 1
      %p103 = por %p101, %p102
      %p104 = scmp.ne.s32.totalorder %s93, %s94
      %p105 = scmp.eq.s32.totalorder %s17, 0
      %p106 = por %p104, %p105
      %p107 = scmp.ne.s32.totalorder %s93, %s94
      %p108 = scmp.eq.s32.totalorder %s18, 1
      %p109 = por %p107, %p108
      %p111 = scmp.ne.s32.totalorder %s94, %s110
      %p112 = scmp.eq.s32.totalorder %s18, 0
      %p113 = por %p111, %p112
      %p114 = scmp.le.s32.totalorder 1, %s12
      %p115 = scmp.lt.s32.totalorder %s12, 3
      %p116 = pnand %p114, %p115
      %p117 = pneg %p116
      // Predicated region
      $region9: #{tpu_custom_call.1} parent=5 // pred_check
        _
      $region10: #{tpu_custom_call.1} parent=5 // pred_check_branch
        %119 = sbr.rel (%p116) target = $region12
      $region11: #{tpu_custom_call.1} parent=5 // pred_region
        %s120 = ssub.s32 %s12, 1
        // Predicated region
        $region13: #{tpu_custom_call.1} parent=11 // pred_check
          %p121 = pneg %p59
        $region14: #{tpu_custom_call.1} parent=11 // pred_check_branch
          %123 = sbr.rel (%p121) target = $region16
        $region15: #{tpu_custom_call.1} parent=11 // pred_region
          _
        $region16: #{tpu_custom_call.1} parent=11 // pred_fallthru
          _
        // Predicated region
        $region17: #{tpu_custom_call.1} parent=11 // pred_check
          %p124 = pneg %p80
        $region18: #{tpu_custom_call.1} parent=11 // pred_check_branch
          %126 = sbr.rel (%p124) target = $region20
        $region19: #{tpu_custom_call.1} parent=11 // pred_region
          _
        $region20: #{tpu_custom_call.1} parent=11 // pred_fallthru
          _
      $region12: #{tpu_custom_call.1} parent=5 // pred_fallthru
        _
      %p127 = scmp.lt.s32.totalorder %s12, 2
      // Predicated region
      $region21: #{tpu_custom_call.1} parent=5 // pred_check
        %p128 = pneg %p127
      $region22: #{tpu_custom_call.1} parent=5 // pred_check_branch
        %130 = sbr.rel (%p128) target = $region24
      $region23: #{tpu_custom_call.1} parent=5 // pred_region
        // Predicated region
        $region25: #{tpu_custom_call.1} parent=23 // pred_check
          %p131 = pneg %p32
        $region26: #{tpu_custom_call.1} parent=23 // pred_check_branch
          %133 = sbr.rel (%p131) target = $region28
        $region27: #{tpu_custom_call.1} parent=23 // pred_region
          %p134 = scmp.lt.s32.totalorder %s12, 1
          %s135 = scalar_select %p134, %s12, 1
          %s136 = smul.addr %s135, 2
          %s137 = scalar_lea.vmem %s0, %s136
        $region28: #{tpu_custom_call.1} parent=23 // pred_fallthru
          _
      $region24: #{tpu_custom_call.1} parent=5 // pred_fallthru
        _
      %p138 = scmp.le.s32.totalorder 1, %s12
      %p139 = scmp.lt.s32.totalorder %s12, 3
      %p140 = pnand %p138, %p139
      %p141 = pneg %p140
      // Predicated region
      $region29: #{tpu_custom_call.1} parent=5 // pred_check
        _
      $region30: #{tpu_custom_call.1} parent=5 // pred_check_branch
        %143 = sbr.rel (%p140) target = $region32
      $region31: #{tpu_custom_call.1} parent=5 // pred_region
        %s144 = ssub.s32 %s12, 1
        %p145 = scmp.lt.s32.totalorder %s17, 1
        %s146 = scalar_select %p145, %s17, 1
        %s147 = smul.addr %s146, 2
        %s148 = scalar_lea.vmem %s0, %s147
        %p149 = pneg %p38
        %p150 = pneg %p35
        %p151 = pneg %p59
        %p152 = pneg %p56
        %p153 = pneg %p80
        %p154 = pneg %p77
        %p155 = pneg %p106
        %p156 = pneg %p103
        %s157 = sand.u32 %s93, 1
        %s158 = scalar_lea.sflag [#allocation3], %s157
        %s159 = sand.u32 %s93, 1
        %s160 = smul.addr %s159, 32
        %s161 = scalar_lea.vmem [#allocation2], %s160
        %p162 = scmp.lt.s32.totalorder %s17, 1
        %s163 = scalar_select %p162, %s17, 1
        %s164 = smul.addr %s163, 2
        %s165 = scalar_lea.vmem %s0, %s164
        %v166 = vld [vmem:[%s165] sm:$0x1]
        %v167 = vld [vmem:[%s165 + $0x1] sm:$0x1]
        %v168 = vand.u32 2147483647, %v167
        %vm169 = vcmp.le.f32.partialorder %v168, 0.7853982
        %vm170 = vcmp.lt.s32.totalorder %v167, 0
        %v171 = vand.u32 %v167, 2139095040
        %v172 = vshrl.u32 %v171, 23
        %v173 = vsub.s32 %v172, 127
        %v174 = vand.u32 2147483647, %v167
        %v175 = vand.u32 %v174, 8388607
        %v176 = vor.u32 %v175, 8388608
        %v177 = vsub.s32 0, %v176
        %v178 = vadd.s32 %v173, 1
        %vm179 = vcmp.gt.s32.totalorder %v178, 0
        %v180 = vsel %vm179, %v178, 0
        %v181 = vshrl.u32 %v180, 5
        %v182 = vand.u32 %v180, 31
        %v183 = vsub.s32 32, %v182
        %v184 = vshrl.u32 683565275, %v183
        %v185 = vshll.u32 683565275, %v182
        %v186 = vshrl.u32 2475754826, %v183
        %v187 = vor.u32 %v185, %v186
        %v188 = vshll.u32 2475754826, %v182
        %v189 = vshrl.u32 2131351028, %v183
        %v190 = vor.u32 %v188, %v189
        %v191 = vshll.u32 2131351028, %v182
        %v192 = vshrl.u32 2102212464, %v183
        %v193 = vor.u32 %v191, %v192
        %v194 = vshll.u32 2102212464, %v182
        %v195 = vshrl.u32 920167782, %v183
        %v196 = vor.u32 %v194, %v195
        %v197 = vshll.u32 920167782, %v182
        %v198 = vshrl.u32 1326507024, %v183
        %v199 = vor.u32 %v197, %v198
        %vm200 = vcmp.lt.s32.totalorder %v181, 1
        %vm201 = vcmp.lt.s32.totalorder %v181, 2
        %vm202 = vcmp.lt.s32.totalorder %v181, 3
        %vm203 = vcmp.lt.s32.totalorder %v181, 4
        %v204 = vsel %vm200, %v184, %v187
        %v205 = vsel %vm203, %v193, 2102212464
        %v206 = vsel %vm202, %v190, %v205
        %v207 = vsel %vm201, %v204, %v206
        %v208 = vsel %vm200, %v187, %v190
        %v209 = vsel %vm203, %v196, 920167782
        %v210 = vsel %vm202, %v193, %v209
        %v211 = vsel %vm201, %v208, %v210
        %v212 = vsel %vm200, %v190, %v193
        %v213 = vsel %vm203, %v199, 1326507024
        %v214 = vsel %vm202, %v196, %v213
        %v215 = vsel %vm201, %v212, %v214
        %v216 = vshll.u32 %v176, 8
        %v217 = vmul.u32.u64.compose %v216, %v215
        %v218 = vextract.low.u32 %v217
        %v219 = vextract.high.u32 %v217
        %v220 = vmul.u32.u64.compose %v216, %v211
        %v221 = vextract.low.u32 %v220
        %v222 = vextract.high.u32 %v220
        %v223 = vmul.u32 %v216, %v207
        %v224 = vadd.s32 %v219, %v221
        %vm225 = vc.u32 %v219, %v221
        %v226 = vadd.s32 %v222, 1
        %v227 = vsel %vm225, %v226, %v222
        %v228 = vadd.s32 %v223, %v227
        %v229 = vadd.s32 %v228, 536870912
        %v230 = vshrl.u32 %v229, 30
        %v231 = vshll.u32 %v230, 30
        %v232 = vsub.s32 %v228, %v231
        %vm233 = vcmp.lt.s32.totalorder %v232, 0
        %v234 = vsub.s32 0, %v232
        %v235 = vsel %vm233, %v234, %v232
        %v236 = vclz %v235
        %v237 = vsub.s32 %v236, 2
        %vm238 = vcmp.gt.s32.totalorder 0, %v237
        %v239 = vsel %vm238, 0, %v237
        %v240 = vsub.s32 32, %v239
        %v241 = vshll.u32 %v232, %v239
        %v242 = vshrl.u32 %v224, %v240
        %v243 = vor.u32 %v241, %v242
        %v244 = vsub.s32 4294967266, %v239
        %v245 = vadd.s32 %v244, 127
        %v246 = vshll.u32 %v245, 23
        %v247 = vor.u32 4788187, %v246
        %v248 = vand.u32 2147483647, %v247
        %v250 = vcvt.s32.f32 %v243
        %v251 = vmul.f32 %v250, %v248
        %v252 = vxor.u32 %v251, 2147483648
        %v253 = vsel %vm170, %v252, %v251
        %v254 = vsub.s32 4, %v230
        %v255 = vsel %vm170, %v254, %v230
        %v256 = vsel %vm169, %v167, %v253
        %v257 = vsel %vm169, 0, %v255
        %v258 = vcosq.f32.pop %v256
        %v259 = vsinq.f32.pop %v256
        %vm260 = vweird.f32 %v167
        %v261 = vand.u32 %v257, 3
        %vm262 = vcmp.lt.s32.totalorder %v261, 2
        %vm263 = vcmp.eq.s32.totalorder %v261, 0
        %v264 = vxor.u32 %v259, 2147483648
        %v265 = vsel %vm263, %v258, %v264
        %vm266 = vcmp.eq.s32.totalorder %v261, 2
        %v267 = vxor.u32 %v258, 2147483648
        %v268 = vsel %vm266, %v267, %v259
        %v269 = vsel %vm262, %v265, %v268
        %v270 = vsel %vm260, nan, %v269
        %v271 = vand.u32 2147483647, %v167
        %vm272 = vcmp.le.f32.partialorder %v271, 0.7853982
        %vm273 = vcmp.lt.s32.totalorder %v167, 0
        %v274 = vand.u32 %v167, 2139095040
        %v275 = vshrl.u32 %v274, 23
        %v276 = vsub.s32 %v275, 127
        %v277 = vand.u32 2147483647, %v167
        %v278 = vand.u32 %v277, 8388607
        %v279 = vor.u32 %v278, 8388608
        %v280 = vsub.s32 0, %v279
        %v281 = vadd.s32 %v276, 1
        %vm282 = vcmp.gt.s32.totalorder %v281, 0
        %v283 = vsel %vm282, %v281, 0
        %v284 = vshrl.u32 %v283, 5
        %v285 = vand.u32 %v283, 31
        %v286 = vsub.s32 32, %v285
        %v287 = vshrl.u32 683565275, %v286
        %v288 = vshll.u32 683565275, %v285
        %v289 = vshrl.u32 2475754826, %v286
        %v290 = vor.u32 %v288, %v289
        %v291 = vshll.u32 2475754826, %v285
        %v292 = vshrl.u32 2131351028, %v286
        %v293 = vor.u32 %v291, %v292
        %v294 = vshll.u32 2131351028, %v285
        %v295 = vshrl.u32 2102212464, %v286
        %v296 = vor.u32 %v294, %v295
        %v297 = vshll.u32 2102212464, %v285
        %v298 = vshrl.u32 920167782, %v286
        %v299 = vor.u32 %v297, %v298
        %v300 = vshll.u32 920167782, %v285
        %v301 = vshrl.u32 1326507024, %v286
        %v302 = vor.u32 %v300, %v301
        %vm303 = vcmp.lt.s32.totalorder %v284, 1
        %vm304 = vcmp.lt.s32.totalorder %v284, 2
        %vm305 = vcmp.lt.s32.totalorder %v284, 3
        %vm306 = vcmp.lt.s32.totalorder %v284, 4
        %v307 = vsel %vm303, %v287, %v290
        %v308 = vsel %vm306, %v296, 2102212464
        %v309 = vsel %vm305, %v293, %v308
        %v310 = vsel %vm304, %v307, %v309
        %v311 = vsel %vm303, %v290, %v293
        %v312 = vsel %vm306, %v299, 920167782
        %v313 = vsel %vm305, %v296, %v312
        %v314 = vsel %vm304, %v311, %v313
        %v315 = vsel %vm303, %v293, %v296
        %v316 = vsel %vm306, %v302, 1326507024
        %v317 = vsel %vm305, %v299, %v316
        %v318 = vsel %vm304, %v315, %v317
        %v319 = vshll.u32 %v279, 8
        %v320 = vmul.u32.u64.compose %v319, %v318
        %v321 = vextract.low.u32 %v320
        %v322 = vextract.high.u32 %v320
        %v323 = vmul.u32.u64.compose %v319, %v314
        %v324 = vextract.low.u32 %v323
        %v325 = vextract.high.u32 %v323
        %v326 = vmul.u32 %v319, %v310
        %v327 = vadd.s32 %v322, %v324
        %vm328 = vc.u32 %v322, %v324
        %v329 = vadd.s32 %v325, 1
        %v330 = vsel %vm328, %v329, %v325
        %v331 = vadd.s32 %v326, %v330
        %v332 = vadd.s32 %v331, 536870912
        %v333 = vshrl.u32 %v332, 30
        %v334 = vshll.u32 %v333, 30
        %v335 = vsub.s32 %v331, %v334
        %vm336 = vcmp.lt.s32.totalorder %v335, 0
        %v337 = vsub.s32 0, %v335
        %v338 = vsel %vm336, %v337, %v335
        %v339 = vclz %v338
        %v340 = vsub.s32 %v339, 2
        %vm341 = vcmp.gt.s32.totalorder 0, %v340
        %v342 = vsel %vm341, 0, %v340
        %v343 = vsub.s32 32, %v342
        %v344 = vshll.u32 %v335, %v342
        %v345 = vshrl.u32 %v327, %v343
        %v346 = vor.u32 %v344, %v345
        %v347 = vsub.s32 4294967266, %v342
        %v348 = vadd.s32 %v347, 127
        %v349 = vshll.u32 %v348, 23
        %v350 = vor.u32 4788187, %v349
        %v351 = vand.u32 2147483647, %v350
        %v353 = vcvt.s32.f32 %v346
        %v354 = vmul.f32 %v353, %v351
        %v355 = vxor.u32 %v354, 2147483648
        %v356 = vsel %vm273, %v355, %v354
        %v357 = vsub.s32 4, %v333
        %v358 = vsel %vm273, %v357, %v333
        %v359 = vsel %vm272, %v167, %v356
        %v360 = vsel %vm272, 0, %v358
        %v361 = vcosq.f32.pop %v359
        %v362 = vsinq.f32.pop %v359
        %vm363 = vweird.f32 %v167
        %v364 = vadd.s32 %v360, 3
        %v365 = vand.u32 %v364, 3
        %vm366 = vcmp.lt.s32.totalorder %v365, 2
        %vm367 = vcmp.eq.s32.totalorder %v365, 0
        %v368 = vxor.u32 %v362, 2147483648
        %v369 = vsel %vm367, %v361, %v368
        %vm370 = vcmp.eq.s32.totalorder %v365, 2
        %v371 = vxor.u32 %v361, 2147483648
        %v372 = vsel %vm370, %v371, %v362
        %v373 = vsel %vm366, %v369, %v372
        %v374 = vsel %vm363, nan, %v373
        %v375 = vld [vmem:[%s1] sm:$0xff]
        %v376 = vld [vmem:[%s1 + $0x8] sm:$0xff]
        %v377 = vld [vmem:[%s1 + $0x10] sm:$0xff]
        %v378 = vld [vmem:[%s1 + $0x18] sm:$0xff]
        %380 = vset.pattern.permute.xlu0 0
        %381 = vperm.xlu0 %380, %v375
        %v382 = vpop.permute.xlu0 %381
        %385 = vset.pattern.permute.xlu0 0
        %386 = vperm.xlu0 %385, %v376
        %v387 = vpop.permute.xlu0 %386
        %390 = vset.pattern.permute.xlu0 0
        %391 = vperm.xlu0 %390, %v377
        %v392 = vpop.permute.xlu0 %391
        %395 = vset.pattern.permute.xlu0 0
        %396 = vperm.xlu0 %395, %v378
        %v397 = vpop.permute.xlu0 %396
        %v399 = vlaneseq
        %v400 = vshrl.u32 %v399, 7
        %v401 = vsub.s32 0, %v400
        %v402 = vrot.slane %v166, %v401
        %v403 = vmul.f32 %v382, %v402
        %v404 = vmul.f32 %v387, %v402
        %v405 = vmul.f32 %v392, %v402
        %v406 = vmul.f32 %v397, %v402
        %407 = vset.pattern.permute.xlu0 1
        %408 = vperm.xlu0 %407, %v375
        %v409 = vpop.permute.xlu0 %408
        %411 = vset.pattern.permute.xlu0 1
        %412 = vperm.xlu0 %411, %v376
        %v413 = vpop.permute.xlu0 %412
        %415 = vset.pattern.permute.xlu0 1
        %416 = vperm.xlu0 %415, %v377
        %v417 = vpop.permute.xlu0 %416
        %419 = vset.pattern.permute.xlu0 1
        %420 = vperm.xlu0 %419, %v378
        %v421 = vpop.permute.xlu0 %420
        %v423 = vlaneseq
        %v424 = vshrl.u32 %v423, 7
        %v425 = vsub.s32 0, %v424
        %v426 = vrot.slane %v270, %v425
        %v427 = vmul.f32 %v409, %v426
        %v428 = vmul.f32 %v413, %v426
        %v429 = vmul.f32 %v417, %v426
        %v430 = vmul.f32 %v421, %v426
        %v431 = vadd.f32 %v403, %v427
        %v432 = vadd.f32 %v404, %v428
        %v433 = vadd.f32 %v405, %v429
        %v434 = vadd.f32 %v406, %v430
        %435 = vset.pattern.permute.xlu0 2
        %436 = vperm.xlu0 %435, %v375
        %v437 = vpop.permute.xlu0 %436
        %439 = vset.pattern.permute.xlu0 2
        %440 = vperm.xlu0 %439, %v376
        %v441 = vpop.permute.xlu0 %440
        %443 = vset.pattern.permute.xlu0 2
        %444 = vperm.xlu0 %443, %v377
        %v445 = vpop.permute.xlu0 %444
        %447 = vset.pattern.permute.xlu0 2
        %448 = vperm.xlu0 %447, %v378
        %v449 = vpop.permute.xlu0 %448
        %v451 = vlaneseq
        %v452 = vshrl.u32 %v451, 7
        %v453 = vsub.s32 0, %v452
        %v454 = vrot.slane %v374, %v453
        %v455 = vmul.f32 %v437, %v454
        %v456 = vmul.f32 %v441, %v454
        %v457 = vmul.f32 %v445, %v454
        %v458 = vmul.f32 %v449, %v454
        %v459 = vsub.f32 %v431, %v455
        %v460 = vsub.f32 %v432, %v456
        %v461 = vsub.f32 %v433, %v457
        %v462 = vsub.f32 %v434, %v458
        %v463 = vld [vmem:[%s2] sm:$0xff]
        %v464 = vld [vmem:[%s2 + $0x8] sm:$0xff]
        %v465 = vld [vmem:[%s2 + $0x10] sm:$0xff]
        %v466 = vld [vmem:[%s2 + $0x18] sm:$0xff]
        %468 = vset.pattern.permute.xlu0 0
        %469 = vperm.xlu0 %468, %v463
        %v470 = vpop.permute.xlu0 %469
        %473 = vset.pattern.permute.xlu0 0
        %474 = vperm.xlu0 %473, %v464
        %v475 = vpop.permute.xlu0 %474
        %478 = vset.pattern.permute.xlu0 0
        %479 = vperm.xlu0 %478, %v465
        %v480 = vpop.permute.xlu0 %479
        %483 = vset.pattern.permute.xlu0 0
        %484 = vperm.xlu0 %483, %v466
        %v485 = vpop.permute.xlu0 %484
        %v487 = vadd.f32 %v459, %v470
        %v488 = vadd.f32 %v460, %v475
        %v489 = vadd.f32 %v461, %v480
        %v490 = vadd.f32 %v462, %v485
        %491 = vst [vmem:[%s161] sm:$0xff] %v487
        %492 = vst [vmem:[%s161 + $0x8] sm:$0xff] %v488
        %493 = vst [vmem:[%s161 + $0x10] sm:$0xff] %v489
        %494 = vst [vmem:[%s161 + $0x18] sm:$0xff] %v490
        %s495 = sand.u32 %s93, 1
        %s496 = scalar_lea.sflag [#allocation3], %s495
        %s497 = sand.u32 %s93, 1
        %s498 = smul.addr %s497, 32
        %s499 = scalar_lea.vmem [#allocation2], %s498
        // Predicated region
        $region33: #{tpu_custom_call.1} parent=31 // pred_check
          %p500 = pneg %p103
        $region34: #{tpu_custom_call.1} parent=31 // pred_check_branch
          %502 = sbr.rel (%p500) target = $region36
        $region35: #{tpu_custom_call.1} parent=31 // pred_region
          %s504 = ssub.s32 512, 512
          %505 = vsyncadd %s496, %s504
          %s506 = smul.addr %s17, 128
          %s507 = scalar_lea.hbm %s3, %s506
          %s508 = sshll.u32 %s499, 4
          %s509 = int_to_ptr.vmem [resolvable:$true] %s508
          %514 = dma.vmem_to_hbm [thread:$0]  %s509, 512, %s507, %s496, 128, 256, 8
        $region36: #{tpu_custom_call.1} parent=31 // pred_fallthru
          _
      $region32: #{tpu_custom_call.1} parent=5 // pred_fallthru
        _
      %p515 = scmp.le.s32.totalorder 2, %s12
      // Predicated region
      $region37: #{tpu_custom_call.1} parent=5 // pred_check
        %p516 = pneg %p515
      $region38: #{tpu_custom_call.1} parent=5 // pred_check_branch
        %518 = sbr.rel (%p516) target = $region40
      $region39: #{tpu_custom_call.1} parent=5 // pred_region
        %s519 = ssub.s32 %s12, 2
        // Predicated region
        $region41: #{tpu_custom_call.1} parent=39 // pred_check
          %p520 = pneg %p109
        $region42: #{tpu_custom_call.1} parent=39 // pred_check_branch
          %522 = sbr.rel (%p520) target = $region44
        $region43: #{tpu_custom_call.1} parent=39 // pred_region
          %s523 = sand.u32 %s94, 1
          %s524 = scalar_lea.sflag [#allocation3], %s523
          %s525 = sand.u32 %s94, 1
          %s526 = smul.addr %s525, 32
          %s527 = scalar_lea.vmem [#allocation2], %s526
          %528 = dma.done %s524, 512
        $region44: #{tpu_custom_call.1} parent=39 // pred_fallthru
          _
      $region40: #{tpu_custom_call.1} parent=5 // pred_fallthru
        _
    $region6: #{tpu_custom_call.1} parent=1 // loop_footer
      %s16 = sadd.s32 1, %s12
    $region7: #{tpu_custom_call.1} parent=1 // loop_footer_branch
      %11 = sbr.rel target = $region3
    $region8: #{tpu_custom_call.1} parent=1 // loop_exit
      _
    %529 = vsyncpa [#allocation3], 1
    %s530 = scalar_lea.sflag [#allocation3], 1
    %531 = vsyncpa %s530, 1

</llo_original>
